<compile_context>
chip_gen: v7x
topology: tpu7x:2x2x1
jax: 0.10.0
libtpu: 0.0.40
codegen_flags: <defaults>
</compile_context>

<pallas_src>
import functools

import jax
import jax.numpy as jnp
from jax.experimental import pallas as pl
from jax.experimental.pallas import tpu as pltpu

_LANES = 128


def _rev_groups_kernel(x_ref, o_ref, *, group):
    """Reverse every contiguous group of `group` lanes of a (rows, 128) tile."""
    x = x_ref[...]
    rows, lanes = x.shape
    lane = jax.lax.broadcasted_iota(jnp.int32, (rows, lanes), 1)

    # Probe the rotate convention once (out[j] = in[j -/+ shift]) so the stage
    # selects below are correct regardless of pltpu.roll's shift direction.
    probe = pltpu.roll(lane, lanes - 1, axis=1)
    rolled_fwd = probe == ((lane + 1) & (lanes - 1))  # all-true iff jnp.roll-like

    # Within-group reversal: f -> (group-1)-f == f XOR (group-1); one butterfly
    # stage per bit.  Each stage only moves lanes inside a group (source lane is
    # always j ^ d), so batch rows never mix and circular wrap never leaks in.
    y = x
    d = 1
    while d < group:
        a = pltpu.roll(y, lanes - d, axis=1)  # source j+d under jnp.roll convention
        b = pltpu.roll(y, d, axis=1)          # source j-d under jnp.roll convention
        take_a = ((lane & d) == 0) == rolled_fwd
        y = jnp.where(take_a, a, b)
        d *= 2
    o_ref[...] = y


def _reverse_lane_dense(x):
    """Fast path (128 % F == 0): bit-reshape to (rows, 128) and permute lanes."""
    B, F = x.shape
    n = B * F
    rows = pl.cdiv(n, _LANES)
    n_pad = rows * _LANES

    flat = x.reshape(n)
    if n_pad != n:
        flat = jnp.pad(flat, (0, n_pad - n))  # pad groups are whole (fake) batch rows
    x2 = flat.reshape(rows, _LANES)

    # Row tile: whole array when small; otherwise 8-aligned, <= 2048 rows (1 MiB f32
    # per block -> ~4 MiB with double-buffered in+out, safe on v7x's smaller VMEM)
    # and always >= 2 grid steps so both v7x TensorCores get work.
    if rows <= 1024:
        tr = rows
    else:
        tr = min(2048, ((rows + 1) // 2 + 7) // 8 * 8)
    grid = (pl.cdiv(rows, tr),)

    out2 = pl.pallas_call(
        functools.partial(_rev_groups_kernel, group=F),
        out_shape=jax.ShapeDtypeStruct((rows, _LANES), x.dtype),
        grid=grid,
        in_specs=[pl.BlockSpec((tr, _LANES), lambda i: (i, 0))],
        out_specs=pl.BlockSpec((tr, _LANES), lambda i: (i, 0)),
        compiler_params=pltpu.CompilerParams(
            dimension_semantics=("parallel",)),
        cost_estimate=pl.CostEstimate(
            flops=0, transcendentals=0,
            bytes_accessed=2 * n_pad * x.dtype.itemsize),
    )(x2)

    return out2.reshape(n_pad)[:n].reshape(B, F)


def _rev_matmul_kernel(x_ref, perm_ref, o_ref):
    # Exact for floating inputs: the permutation matrix is 0/1 and the dot runs
    # at HIGHEST precision with an f32 accumulator.
    # TODO(synk): integer inputs with |x| > 2^24 would lose precision on this path.
    out = jnp.dot(x_ref[...].astype(jnp.float32), perm_ref[...],
                  preferred_element_type=jnp.float32,
                  precision=jax.lax.Precision.HIGHEST)
    o_ref[...] = out.astype(o_ref.dtype)


def _reverse_generic(x):
    """Fallback for feature sizes that do not divide 128."""
    B, F = x.shape
    perm = jnp.eye(F, dtype=jnp.float32)[::-1]  # anti-diagonal: x @ perm == x[:, ::-1]
    tb = B if B <= 4096 else 4096
    grid = (pl.cdiv(B, tb),)
    return pl.pallas_call(
        _rev_matmul_kernel,
        out_shape=jax.ShapeDtypeStruct((B, F), x.dtype),
        grid=grid,
        in_specs=[pl.BlockSpec((tb, F), lambda i: (i, 0)),
                  pl.BlockSpec((F, F), lambda i: (0, 0))],  # constant block -> resident, no re-DMA
        out_specs=pl.BlockSpec((tb, F), lambda i: (i, 0)),
        compiler_params=pltpu.CompilerParams(
            dimension_semantics=("parallel",)),
        cost_estimate=pl.CostEstimate(
            flops=2 * B * F * F, transcendentals=0,
            bytes_accessed=2 * B * F * x.dtype.itemsize + F * F * 4),
    )(x, perm)


def reverse_layer(inputs, cond_inputs=None, mode='direct'):
    """Forward of the RealNVP `Reverse` layer: (inputs[:, ::-1], zeros(B, 1)).

    The reverse permutation is its own inverse, so 'direct' and 'inverse'
    compute the same thing; cond_inputs is accepted for API parity but unused
    (matching the PyTorch module).
    """
    del cond_inputs, mode
    B, F = inputs.shape
    if _LANES % F == 0:
        out = _reverse_lane_dense(inputs)
    else:
        out = _reverse_generic(inputs)
    logdet = jnp.zeros((B, 1), jnp.float32)  # torch.zeros(B, 1) default dtype
    return out, logdet


if __name__ == "__main__":
    B, num_inputs = 4, 8
    key = jax.random.PRNGKey(0)
    x = jax.random.normal(key, (B, num_inputs), jnp.float32)

    out, logdet = reverse_layer(x, mode='direct')
    out = jax.block_until_ready(out)
    logdet = jax.block_until_ready(logdet)
    assert out.shape == (B, num_inputs)
    assert logdet.shape == (B, 1)
    assert jnp.array_equal(out, x[:, ::-1])
    assert jnp.array_equal(logdet, jnp.zeros((B, 1), jnp.float32))

    # inverse mode: applying the layer again recovers the original input.
    inv, neg_logdet = reverse_layer(out, mode='inverse')
    assert jnp.array_equal(jax.block_until_ready(inv), x)
    assert jnp.array_equal(neg_logdet, jnp.zeros((B, 1), jnp.float32))

    # larger batch -> lane-dense path with >= 2 grid steps and a partial last block.
    xb = jax.random.normal(jax.random.PRNGKey(1), (20000, num_inputs), jnp.float32)
    ob, _ = reverse_layer(xb)
    assert jnp.array_equal(jax.block_until_ready(ob), xb[:, ::-1])

    # feature size that does not divide 128 -> generic fallback kernel.
    xg = jax.random.normal(jax.random.PRNGKey(2), (64, 12), jnp.float32)
    og, _ = reverse_layer(xg)
    assert jnp.array_equal(jax.block_until_ready(og), xg[:, ::-1])

    print("KERNEL_OK")
</pallas_src>

<mosaic_0001>
module attributes {stable_mosaic.version = 11 : i64} {
  func.func @_rev_groups_kernel(%arg0: i32, %arg1: memref<1x128xf32, #tpu.memory_space<vmem>>, %arg2: memref<1x128xf32, #tpu.memory_space<vmem>>) attributes {dimension_semantics = [#tpu.dimension_semantics<parallel>], iteration_bounds = array<i64: 1>, scalar_prefetch = 0 : i64, scratch_operands = 0 : i64, tpu.core_type = #tpu.core_type<tc>, window_params = [{transform_indices = @transform_0, window_bounds = array<i64: 1, 128>}, {transform_indices = @transform_1, window_bounds = array<i64: 1, 128>}]} {
    %c0 = arith.constant 0 : index
    %c0_0 = arith.constant 0 : index
    %0 = vector.load %arg1[%c0, %c0_0] : memref<1x128xf32, #tpu.memory_space<vmem>>, vector<1x128xf32>
    %1 = tpu.iota {dimensions = array<i32: 1>} : vector<1x128xi32>
    %c127_i32 = arith.constant 127 : i32
    %2 = tpu.dynamic_rotate %1 by %c127_i32 dim 1 : vector<1x128xi32>, i32 -> vector<1x128xi32>
    %c1_i32 = arith.constant 1 : i32
    %3 = vector.broadcast %c1_i32 : i32 to vector<1x128xi32>
    %4 = arith.addi %1, %3 : vector<1x128xi32>
    %c127_i32_1 = arith.constant 127 : i32
    %5 = vector.broadcast %c127_i32_1 : i32 to vector<1x128xi32>
    %6 = arith.andi %4, %5 : vector<1x128xi32>
    %7 = arith.cmpi eq, %2, %6 : vector<1x128xi32>
    %c127_i32_2 = arith.constant 127 : i32
    %8 = tpu.dynamic_rotate %0 by %c127_i32_2 dim 1 : vector<1x128xf32>, i32 -> vector<1x128xf32>
    %c1_i32_3 = arith.constant 1 : i32
    %9 = tpu.dynamic_rotate %0 by %c1_i32_3 dim 1 : vector<1x128xf32>, i32 -> vector<1x128xf32>
    %c1_i32_4 = arith.constant 1 : i32
    %10 = vector.broadcast %c1_i32_4 : i32 to vector<1x128xi32>
    %11 = arith.andi %1, %10 : vector<1x128xi32>
    %c0_i32 = arith.constant 0 : i32
    %12 = vector.broadcast %c0_i32 : i32 to vector<1x128xi32>
    %13 = arith.cmpi eq, %11, %12 : vector<1x128xi32>
    %14 = arith.xori %13, %7 : vector<1x128xi1>
    %cst = arith.constant dense<true> : vector<1x128xi1>
    %15 = arith.xori %14, %cst : vector<1x128xi1>
    %16 = arith.select %15, %8, %9 : vector<1x128xi1>, vector<1x128xf32>
    %c126_i32 = arith.constant 126 : i32
    %17 = tpu.dynamic_rotate %16 by %c126_i32 dim 1 : vector<1x128xf32>, i32 -> vector<1x128xf32>
    %c2_i32 = arith.constant 2 : i32
    %18 = tpu.dynamic_rotate %16 by %c2_i32 dim 1 : vector<1x128xf32>, i32 -> vector<1x128xf32>
    %c2_i32_5 = arith.constant 2 : i32
    %19 = vector.broadcast %c2_i32_5 : i32 to vector<1x128xi32>
    %20 = arith.andi %1, %19 : vector<1x128xi32>
    %c0_i32_6 = arith.constant 0 : i32
    %21 = vector.broadcast %c0_i32_6 : i32 to vector<1x128xi32>
    %22 = arith.cmpi eq, %20, %21 : vector<1x128xi32>
    %23 = arith.xori %22, %7 : vector<1x128xi1>
    %cst_7 = arith.constant dense<true> : vector<1x128xi1>
    %24 = arith.xori %23, %cst_7 : vector<1x128xi1>
    %25 = arith.select %24, %17, %18 : vector<1x128xi1>, vector<1x128xf32>
    %c124_i32 = arith.constant 124 : i32
    %26 = tpu.dynamic_rotate %25 by %c124_i32 dim 1 : vector<1x128xf32>, i32 -> vector<1x128xf32>
    %c4_i32 = arith.constant 4 : i32
    %27 = tpu.dynamic_rotate %25 by %c4_i32 dim 1 : vector<1x128xf32>, i32 -> vector<1x128xf32>
    %c4_i32_8 = arith.constant 4 : i32
    %28 = vector.broadcast %c4_i32_8 : i32 to vector<1x128xi32>
    %29 = arith.andi %1, %28 : vector<1x128xi32>
    %c0_i32_9 = arith.constant 0 : i32
    %30 = vector.broadcast %c0_i32_9 : i32 to vector<1x128xi32>
    %31 = arith.cmpi eq, %29, %30 : vector<1x128xi32>
    %32 = arith.xori %31, %7 : vector<1x128xi1>
    %cst_10 = arith.constant dense<true> : vector<1x128xi1>
    %33 = arith.xori %32, %cst_10 : vector<1x128xi1>
    %34 = arith.select %33, %26, %27 : vector<1x128xi1>, vector<1x128xf32>
    %c0_11 = arith.constant 0 : index
    %c0_12 = arith.constant 0 : index
    %35 = vector.load %arg2[%c0_11, %c0_12] : memref<1x128xf32, #tpu.memory_space<vmem>>, vector<1x128xf32>
    tpu.vector_store %arg2[%c0_11, %c0_12], %34 {strides = array<i32>} : memref<1x128xf32, #tpu.memory_space<vmem>>, vector<1x128xf32>,
    return
  }
  func.func @transform_0(%arg0: i32) -> (i32, i32) {
    %c0_i32 = arith.constant 0 : i32
    %c0_i32_0 = arith.constant 0 : i32
    return %arg0, %c0_i32 : i32, i32
  }
  func.func @transform_1(%arg0: i32) -> (i32, i32) {
    %c0_i32 = arith.constant 0 : i32
    %c0_i32_0 = arith.constant 0 : i32
    return %arg0, %c0_i32 : i32, i32
  }
}

</mosaic_0001>

<llo_original>
// kernel: tpu_custom_call.1
$region0: #{tpu_custom_call.1}
  #allocation0 [shape = 'u32[]', space=smem, size = 0x4, offset = 0x4, fixed_abs, tag = 'smem constant byte address 0x4 - core index']
  #allocation1 [shape = 'u32[144,128]{1,0:T(1,128)}', space=vmem, size = 0x12000, scoped, tag = 'internal scratch']
  %s0 = inlined_call_operand.hbm [shape: f32[1,128], index: 0, kind: input, shape index: {}]
  %s1 = inlined_call_operand.hbm [shape: f32[1,128], index: 1, kind: output, shape index: {}]
  %s2 = sld [smem:[#allocation0]]
  $region18: #{tpu_custom_call.1} parent=0
    _
  %s4 = ssub.s32 1, %s2
  %s5 = scalar_select 0, %s4, %s2
  $region1: #{tpu_custom_call.1} parent=0
    #allocation2 [shape = 'u8[512]{0}', space=vmem, size = 0x400, scoped, tag = 'input window, operand 0, single buffered']
    #allocation3 [shape = 's32[1]{0}', space=sflag, size = 0x4, scoped, tag = 'scoped memory for tpu_custom_call.1']
    #allocation4 [shape = 's32[1]{0}', space=sflag, size = 0x4, scoped, tag = 'scoped memory for tpu_custom_call.1']
    #allocation5 [shape = 'u8[512]{0}', space=vmem, size = 0x400, scoped, tag = 'output window, operand 0, single buffered']
    %6 = vsyncpa [#allocation3], 0
    %7 = vsyncpa [#allocation4], 0
    // Predicated region
    $region2: #{tpu_custom_call.1} parent=1 // pred_check
      _
    $region3: #{tpu_custom_call.1} parent=1 // pred_check_branch
      %9 = sbr.rel (0) target = $region5
    $region4: #{tpu_custom_call.1} parent=1 // pred_region
      %s11 = ssub.s32 16, 16
      %12 = vsyncadd [#allocation3], %s11
      %s14 = sshll.u32 [#allocation2], 4
      %s15 = int_to_ptr.vmem [resolvable:$true] %s14
      %17 = dma.hbm_to_vmem [thread:$0]  %s0, 16, %s15, [#allocation3]
    $region5: #{tpu_custom_call.1} parent=1 // pred_fallthru
      _
    // Predicated region
    $region6: #{tpu_custom_call.1} parent=1 // pred_check
      _
    $region7: #{tpu_custom_call.1} parent=1 // pred_check_branch
      %19 = sbr.rel (0) target = $region9
    $region8: #{tpu_custom_call.1} parent=1 // pred_region
      %20 = dma.done [#allocation3], 16
    $region9: #{tpu_custom_call.1} parent=1 // pred_fallthru
      _
    %v21 = vld [vmem:[#allocation2] sm:$0x1]
    %v22 = vlaneseq
    %v23 = vand.u32 %v22, 127
    %24 = vrot.lane.b32.xlu0 %v23, 127
    %v25 = vpop.permute.xlu0 %24
    %v26 = vadd.s32 %v23, 1
    %v27 = vand.u32 %v26, 127
    %vm28 = vcmp.eq.s32.totalorder %v25, %v27
    %29 = vrot.lane.b32.xlu0 %v21, 127
    %v30 = vpop.permute.xlu0 %29
    %31 = vrot.lane.b32.xlu0 %v21, 1
    %v32 = vpop.permute.xlu0 %31
    %v33 = vand.u32 %v23, 1
    %vm34 = vcmp.eq.s32.totalorder %v33, 0
    %vm35 = vmxor %vm34, %vm28
    %vm36 = vmxor %vm35, 1
    %v37 = vsel %vm36, %v30, %v32
    %38 = vrot.lane.b32.xlu0 %v37, 126
    %v39 = vpop.permute.xlu0 %38
    %40 = vrot.lane.b32.xlu0 %v37, 2
    %v41 = vpop.permute.xlu0 %40
    %v42 = vand.u32 %v23, 2
    %vm43 = vcmp.eq.s32.totalorder %v42, 0
    %vm44 = vmxor %vm43, %vm28
    %vm45 = vmxor %vm44, 1
    %v46 = vsel %vm45, %v39, %v41
    %47 = vrot.lane.b32.xlu0 %v46, 124
    %v48 = vpop.permute.xlu0 %47
    %49 = vrot.lane.b32.xlu0 %v46, 4
    %v50 = vpop.permute.xlu0 %49
    %v51 = vand.u32 %v23, 4
    %vm52 = vcmp.eq.s32.totalorder %v51, 0
    %vm53 = vmxor %vm52, %vm28
    %vm54 = vmxor %vm53, 1
    %v55 = vsel %vm54, %v48, %v50
    %56 = vst [vmem:[#allocation5] sm:$0x1] %v55
    // Predicated region
    $region10: #{tpu_custom_call.1} parent=1 // pred_check
      _
    $region11: #{tpu_custom_call.1} parent=1 // pred_check_branch
      %58 = sbr.rel (0) target = $region13
    $region12: #{tpu_custom_call.1} parent=1 // pred_region
      %s60 = ssub.s32 16, 16
      %61 = vsyncadd [#allocation4], %s60
      %s63 = sshll.u32 [#allocation5], 4
      %s64 = int_to_ptr.vmem [resolvable:$true] %s63
      %66 = dma.vmem_to_hbm [thread:$0]  %s64, 16, %s1, [#allocation4]
    $region13: #{tpu_custom_call.1} parent=1 // pred_fallthru
      _
    // Predicated region
    $region14: #{tpu_custom_call.1} parent=1 // pred_check
      _
    $region15: #{tpu_custom_call.1} parent=1 // pred_check_branch
      %68 = sbr.rel (0) target = $region17
    $region16: #{tpu_custom_call.1} parent=1 // pred_region
      %69 = dma.done [#allocation4], 16
    $region17: #{tpu_custom_call.1} parent=1 // pred_fallthru
      _
    %70 = vsyncpa [#allocation3], 1
    %71 = vsyncpa [#allocation4], 1

</llo_original>
